<compile_context>
chip_gen: v6e
topology: v6e:2x2x1
jax: 0.10.0
libtpu: 0.0.40
codegen_flags: <defaults>
</compile_context>

<pallas_src>
import functools

import jax
import jax.numpy as jnp
import numpy as np
from jax import lax
from jax.experimental import pallas as pl
from jax.experimental.pallas import tpu as pltpu


# ------------------------------ sizing helpers ------------------------------


def _round_up(x, m):
    return (x + m - 1) // m * m


def _tpu_budget():
    """Return (block_budget_bytes, vmem_limit_bytes, num_tensorcores)."""
    vmem_cap = 0
    try:
        vmem_cap = int(pltpu.get_tpu_info().vmem_capacity_bytes)
    except Exception:
        vmem_cap = 0
    if vmem_cap <= 0:
        # Unknown part: assume the smallest per-core VMEM (v7x-class, 64 MiB)
        # and a 2-TensorCore chip -- safe everywhere.
        vmem_cap = 64 * 1024 * 1024
    # Explicit scoped-VMEM limit, leaving headroom under the physical size.
    vmem_limit = int(min(100 * 1024 * 1024, (vmem_cap * 3) // 4))
    # Peak pipelined VMEM ~= 4x block (input + output, double-buffered) plus
    # weights/scratch/internal scratch, so budget ~ limit / 6.
    budget = int(max(2 * 1024 * 1024, min(16 * 1024 * 1024, vmem_limit // 6)))
    num_tc = 1 if vmem_cap >= 100 * 1024 * 1024 else 2
    return budget, vmem_limit, num_tc


def _per_image_vmem_bytes(C, HW, itemsize):
    # Account for the physical (sublane, lane) padding inside VMEM.
    sub = max(1, 32 // itemsize)          # 8 for f32, 16 for bf16, 32 for int8
    return _round_up(C, sub) * _round_up(HW, 128) * itemsize


# ------------------------------- kernels -----------------------------------


def _ca_fused_kernel(x_ref, w1_ref, w2_ref, o_ref):
    # x_ref / o_ref: (Nb, C, HW); w1_ref: (Cr, C); w2_ref: (C, Cr)
    # Global max over the lane-dense spatial axis (XLU lane reduce); HW is the
    # full logical extent, so no tail masking is needed here.
    m = jnp.max(x_ref[...], axis=-1).astype(jnp.float32)                       # (Nb, C)
    # fc1 + ReLU and fc2 as VPU broadcast-multiply + XLU lane reduce.  A
    # (Cr,C)@(C,1) MXU matmul would use 1 of 128/256 output lanes and pay the
    # MXU push/pop latency for ~C MACs, so keep these off the MXU.
    h = jnp.maximum(jnp.sum(w1_ref[...][None] * m[:, None, :], axis=-1), 0.0)  # (Nb, Cr)
    a = jnp.sum(w2_ref[...][None] * h[:, None, :], axis=-1)                    # (Nb, C)
    att = jax.nn.sigmoid(a)                                                    # (Nb, C) f32
    # Gate in the native dtype (no full-tile f32 upcast).
    o_ref[...] = x_ref[...] * att[:, :, None].astype(o_ref.dtype)


def _ca_att_kernel(x_ref, w1_ref, w2_ref, att_ref, m_sc, *, hw, thw):
    # Pass 1 (two-pass path): streaming global max over HW tiles, then the
    # tiny fc1/relu/fc2/sigmoid on the last tile.
    # x_ref: (C, thw); att_ref: (C, 1) f32; m_sc: (1, C) f32 scratch.
    t = pl.program_id(1)

    @pl.when(t == 0)
    def _():
        m_sc[...] = jnp.full_like(m_sc, -jnp.inf)

    tile = x_ref[...]
    if hw % thw != 0:
        # cdiv grid: the last tile extends past HW; neutralize garbage lanes
        # before the max (cheap VPU compare+select, only when needed).
        lane = t * thw + lax.broadcasted_iota(jnp.int32, tile.shape, 1)
        tile = jnp.where(lane < hw, tile, jnp.finfo(tile.dtype).min)

    tile_max = jnp.max(tile, axis=-1).astype(jnp.float32)                      # (C,)
    m_sc[...] = jnp.maximum(m_sc[...], tile_max[None, :])

    @pl.when(t == pl.num_programs(1) - 1)
    def _():
        m = m_sc[...]                                                          # (1, C)
        h = jnp.maximum(jnp.sum(w1_ref[...] * m, axis=-1), 0.0)                # (Cr,)
        a = jnp.sum(w2_ref[...] * h[None, :], axis=-1)                         # (C,)
        att_ref[...] = jax.nn.sigmoid(a)[:, None]                              # (C, 1)


def _ca_gate_kernel(att_ref, x_ref, o_ref):
    # Pass 2 (two-pass path): gated multiply, tiled over HW.  Out-of-range
    # lanes of the tail tile are discarded by the masked writeback -> no mask.
    o_ref[...] = x_ref[...] * att_ref[...].astype(o_ref.dtype)


# ------------------------------- wrappers -----------------------------------


def _channel_attention_fused(xr, w1, w2, budget, vmem_limit, num_tc):
    N, C, HW = xr.shape
    Cr = w1.shape[0]
    per_image = _per_image_vmem_bytes(C, HW, xr.dtype.itemsize)

    # As many images per block as the budget allows (bigger blocks amortize
    # the ~0.35us per-step overhead on this purely HBM-bound op).
    nb = int(max(1, min(budget // per_image, N)))
    grid_len = pl.cdiv(N, nb)
    if num_tc > 1 and N > 1:
        # Multi-TensorCore (v7x-class): the parallel grid axis is sharded
        # across cores -- make the grid length a multiple of the core count
        # (ideally >= 2 steps per core) so no core idles.
        target = min(N, max(grid_len, 2 * num_tc))
        target = min(N, _round_up(target, num_tc))
        nb = int(max(1, -(-N // target)))
        grid_len = pl.cdiv(N, nb)

    # NOTE: when N % nb != 0 the tail block processes garbage rows whose
    # outputs are discarded by the masked writeback -- harmless.
    # NOTE: input_output_aliases={0: 0} is skipped: xr may alias the caller's
    # x (reshape view) that the caller still needs after the call.
    return pl.pallas_call(
        _ca_fused_kernel,
        out_shape=jax.ShapeDtypeStruct((N, C, HW), xr.dtype),
        grid_spec=pltpu.PrefetchScalarGridSpec(
            num_scalar_prefetch=0,
            grid=(grid_len,),
            in_specs=[
                pl.BlockSpec((nb, C, HW), lambda i: (i, 0, 0)),
                pl.BlockSpec((Cr, C), lambda i: (0, 0)),
                pl.BlockSpec((C, Cr), lambda i: (0, 0)),
            ],
            out_specs=pl.BlockSpec((nb, C, HW), lambda i: (i, 0, 0)),
        ),
        compiler_params=pltpu.CompilerParams(
            dimension_semantics=("parallel",),
            vmem_limit_bytes=vmem_limit),
    )(xr, w1, w2)


def _channel_attention_two_pass(xr, w1, w2, budget, vmem_limit):
    N, C, HW = xr.shape
    Cr = w1.shape[0]
    itemsize = xr.dtype.itemsize
    sub = max(1, 32 // itemsize)
    c_pad = _round_up(C, sub)
    hw_cap = _round_up(HW, 128)

    def pick_thw(n_streamed_arrays):
        cap = (budget // (n_streamed_arrays * c_pad * itemsize)) // 128 * 128
        return int(max(128, min(cap, hw_cap)))

    # Pass 1 streams only the input tile; pass 2 streams input + output, so
    # its tile is charged twice.  cdiv grids: no divisor constraint on thw.
    thw1 = pick_thw(1)
    thw2 = pick_thw(2)
    n_t1 = pl.cdiv(HW, thw1)
    n_t2 = pl.cdiv(HW, thw2)

    # Pass 1: per-image attention logits, (N, C, 1) f32.
    att = pl.pallas_call(
        functools.partial(_ca_att_kernel, hw=HW, thw=thw1),
        out_shape=jax.ShapeDtypeStruct((N, C, 1), jnp.float32),
        grid_spec=pltpu.PrefetchScalarGridSpec(
            num_scalar_prefetch=0,
            grid=(N, n_t1),
            in_specs=[
                pl.BlockSpec((None, C, thw1), lambda n, t: (n, 0, t)),
                pl.BlockSpec((Cr, C), lambda n, t: (0, 0)),
                pl.BlockSpec((C, Cr), lambda n, t: (0, 0)),
            ],
            out_specs=pl.BlockSpec((None, C, 1), lambda n, t: (n, 0, 0)),
            scratch_shapes=[pltpu.VMEM((1, C), jnp.float32)],
        ),
        compiler_params=pltpu.CompilerParams(
            dimension_semantics=("parallel", "arbitrary"),
            vmem_limit_bytes=vmem_limit),
    )(xr, w1, w2)

    # Pass 2: gated multiply tiled over HW; both axes parallel.
    return pl.pallas_call(
        _ca_gate_kernel,
        out_shape=jax.ShapeDtypeStruct((N, C, HW), xr.dtype),
        grid_spec=pltpu.PrefetchScalarGridSpec(
            num_scalar_prefetch=0,
            grid=(N, n_t2),
            in_specs=[
                pl.BlockSpec((None, C, 1), lambda n, t: (n, 0, 0)),
                pl.BlockSpec((None, C, thw2), lambda n, t: (n, 0, t)),
            ],
            out_specs=pl.BlockSpec((None, C, thw2), lambda n, t: (n, 0, t)),
        ),
        compiler_params=pltpu.CompilerParams(
            dimension_semantics=("parallel", "parallel"),
            vmem_limit_bytes=vmem_limit),
    )(att, xr)


def channel_attention(x, w1, w2, *, block_budget_bytes=None):
    """x: (N, C, H, W) float.  w1: (C//16, C).  w2: (C, C//16)."""
    N, C, H, W = x.shape
    HW = H * W

    budget, vmem_limit, num_tc = _tpu_budget()
    if block_budget_bytes is not None:
        budget = int(block_budget_bytes)

    # No padding / slicing wrapper passes: the (C, HW) last dims of the block
    # equal the full array dims, which is exempt from the (8,128) rule; the
    # only cost of a non-multiple-of-128 HW is masked stores on the output,
    # which is far cheaper than 2 extra HBM passes over the activation.
    xr = x.reshape(N, C, HW)

    per_image = _per_image_vmem_bytes(C, HW, xr.dtype.itemsize)
    if per_image <= budget:
        out = _channel_attention_fused(xr, w1, w2, budget, vmem_limit, num_tc)
    else:
        # One image's (C, HW) slab exceeds the block budget (large feature
        # maps, esp. on v7x's smaller VMEM): two-pass HW-tiled scheme.
        out = _channel_attention_two_pass(xr, w1, w2, budget, vmem_limit)

    return out.reshape(N, C, H, W)


def channel_attention_ref(x, w1, w2):
    """Pure-JAX reference mirroring the PyTorch forward."""
    m = jnp.max(x, axis=(2, 3), keepdims=True)                 # adaptive_max_pool2d(x,1)
    h = jnp.maximum(jnp.einsum('rc,ncij->nrij', w1, m), 0.0)   # fc1 + relu
    a = jnp.einsum('cr,nrij->ncij', w2, h)                     # fc2
    return x * jax.nn.sigmoid(a)


if __name__ == "__main__":
    key = jax.random.PRNGKey(0)
    C = 32                                   # in_planes must be divisible by 16
    Cr = C // 16

    k1, k2, kx1, kx2, kx3 = jax.random.split(key, 5)
    # Conv2d(in, out, 1, bias=False) weights (out, in, 1, 1) squeezed to 2D.
    w1 = jax.random.normal(k1, (Cr, C), dtype=jnp.float32) * 0.1
    w2 = jax.random.normal(k2, (C, Cr), dtype=jnp.float32) * 0.1

    # Test A: fused single-pass path (HW a multiple of 128).
    xA = jax.random.normal(kx1, (2, C, 16, 16), dtype=jnp.float32)
    outA = jax.block_until_ready(channel_attention(xA, w1, w2))
    np.testing.assert_allclose(np.asarray(outA),
                               np.asarray(channel_attention_ref(xA, w1, w2)),
                               rtol=1e-5, atol=1e-5)

    # Test B: fused path with non-multiple-of-128 HW (7x7 -> 49), no padding.
    xB = jax.random.normal(kx2, (2, C, 7, 7), dtype=jnp.float32)
    outB = jax.block_until_ready(channel_attention(xB, w1, w2))
    np.testing.assert_allclose(np.asarray(outB),
                               np.asarray(channel_attention_ref(xB, w1, w2)),
                               rtol=1e-5, atol=1e-5)

    # Test C: force the two-pass HW-tiled fallback with a tiny VMEM budget.
    outC = jax.block_until_ready(
        channel_attention(xA, w1, w2, block_budget_bytes=16 * 1024))
    np.testing.assert_allclose(np.asarray(outC),
                               np.asarray(channel_attention_ref(xA, w1, w2)),
                               rtol=1e-5, atol=1e-5)

    # Test D: two-pass fallback with a ragged tail tile (17x17 -> HW=289).
    xD = jax.random.normal(kx3, (2, C, 17, 17), dtype=jnp.float32)
    outD = jax.block_until_ready(
        channel_attention(xD, w1, w2, block_budget_bytes=16 * 1024))
    np.testing.assert_allclose(np.asarray(outD),
                               np.asarray(channel_attention_ref(xD, w1, w2)),
                               rtol=1e-5, atol=1e-5)

    print("KERNEL_OK")
</pallas_src>

<mosaic_0001>
module attributes {stable_mosaic.version = 11 : i64} {
  func.func @_ca_fused_kernel(%arg0: i32, %arg1: memref<1x32x256xf32, #tpu.memory_space<vmem>>, %arg2: memref<2x32xf32, #tpu.memory_space<vmem>>, %arg3: memref<32x2xf32, #tpu.memory_space<vmem>>, %arg4: memref<1x32x256xf32, #tpu.memory_space<vmem>>) attributes {dimension_semantics = [#tpu.dimension_semantics<parallel>], iteration_bounds = array<i64: 2>, scalar_prefetch = 0 : i64, scratch_operands = 0 : i64, tpu.core_type = #tpu.core_type<tc>, window_params = [{transform_indices = @transform_0, window_bounds = array<i64: 1, 32, 256>}, {pipeline_mode = #tpu.pipeline_mode<synchronous>, transform_indices = @transform_1, window_bounds = array<i64: 2, 32>}, {pipeline_mode = #tpu.pipeline_mode<synchronous>, transform_indices = @transform_2, window_bounds = array<i64: 32, 2>}, {transform_indices = @transform_3, window_bounds = array<i64: 1, 32, 256>}]} {
    %c0 = arith.constant 0 : index
    %c0_0 = arith.constant 0 : index
    %c0_1 = arith.constant 0 : index
    %0 = vector.load %arg1[%c0, %c0_0, %c0_1] : memref<1x32x256xf32, #tpu.memory_space<vmem>>, vector<1x32x256xf32>
    %cst = arith.constant dense<0xFF800000> : vector<1x32xf32>
    %1 = vector.multi_reduction <maximumf>, %0, %cst [2] : vector<1x32x256xf32> to vector<1x32xf32>
    %c0_2 = arith.constant 0 : index
    %c0_3 = arith.constant 0 : index
    %2 = vector.load %arg2[%c0_2, %c0_3] : memref<2x32xf32, #tpu.memory_space<vmem>>, vector<2x32xf32>
    %3 = vector.shape_cast %2 : vector<2x32xf32> to vector<1x2x32xf32>
    %4 = vector.shape_cast %1 : vector<1x32xf32> to vector<1x1x32xf32>
    %5 = vector.broadcast %4 : vector<1x1x32xf32> to vector<1x2x32xf32>
    %6 = arith.mulf %3, %5 : vector<1x2x32xf32>
    %cst_4 = arith.constant dense<0.000000e+00> : vector<1x2xf32>
    %7 = vector.multi_reduction <add>, %6, %cst_4 [2] : vector<1x2x32xf32> to vector<1x2xf32>
    %cst_5 = arith.constant 0.000000e+00 : f32
    %8 = vector.broadcast %cst_5 : f32 to vector<1x2xf32>
    %9 = arith.maximumf %7, %8 : vector<1x2xf32>
    %c0_6 = arith.constant 0 : index
    %c0_7 = arith.constant 0 : index
    %10 = vector.load %arg3[%c0_6, %c0_7] : memref<32x2xf32, #tpu.memory_space<vmem>>, vector<32x2xf32>
    %11 = vector.shape_cast %10 : vector<32x2xf32> to vector<1x32x2xf32>
    %12 = vector.shape_cast %9 : vector<1x2xf32> to vector<1x1x2xf32>
    %13 = vector.broadcast %12 : vector<1x1x2xf32> to vector<1x32x2xf32>
    %14 = arith.mulf %11, %13 : vector<1x32x2xf32>
    %cst_8 = arith.constant dense<0.000000e+00> : vector<1x32xf32>
    %15 = vector.multi_reduction <add>, %14, %cst_8 [2] : vector<1x32x2xf32> to vector<1x32xf32>
    %16 = arith.negf %15 : vector<1x32xf32>
    %17 = math.exp %16 : vector<1x32xf32>
    %cst_9 = arith.constant 1.000000e+00 : f32
    %18 = vector.broadcast %cst_9 : f32 to vector<1x32xf32>
    %19 = arith.addf %18, %17 : vector<1x32xf32>
    %20 = arith.divf %18, %19 : vector<1x32xf32>
    %c0_10 = arith.constant 0 : index
    %c0_11 = arith.constant 0 : index
    %c0_12 = arith.constant 0 : index
    %21 = vector.load %arg1[%c0_10, %c0_11, %c0_12] : memref<1x32x256xf32, #tpu.memory_space<vmem>>, vector<1x32x256xf32>
    %22 = vector.shape_cast %20 : vector<1x32xf32> to vector<1x32x1xf32>
    %23 = vector.broadcast %22 : vector<1x32x1xf32> to vector<1x32x256xf32>
    %24 = arith.mulf %21, %23 : vector<1x32x256xf32>
    %c0_13 = arith.constant 0 : index
    %c0_14 = arith.constant 0 : index
    %c0_15 = arith.constant 0 : index
    %25 = vector.load %arg4[%c0_13, %c0_14, %c0_15] : memref<1x32x256xf32, #tpu.memory_space<vmem>>, vector<1x32x256xf32>
    tpu.vector_store %arg4[%c0_13, %c0_14, %c0_15], %24 {strides = array<i32>} : memref<1x32x256xf32, #tpu.memory_space<vmem>>, vector<1x32x256xf32>,
    return
  }
  func.func @transform_0(%arg0: i32) -> (i32, i32, i32) {
    %c0_i32 = arith.constant 0 : i32
    %c0_i32_0 = arith.constant 0 : i32
    %c0_i32_1 = arith.constant 0 : i32
    return %arg0, %c0_i32, %c0_i32_0 : i32, i32, i32
  }
  func.func @transform_1(%arg0: i32) -> (i32, i32) {
    %c0_i32 = arith.constant 0 : i32
    %c0_i32_0 = arith.constant 0 : i32
    %c0_i32_1 = arith.constant 0 : i32
    return %c0_i32, %c0_i32_0 : i32, i32
  }
  func.func @transform_2(%arg0: i32) -> (i32, i32) {
    %c0_i32 = arith.constant 0 : i32
    %c0_i32_0 = arith.constant 0 : i32
    %c0_i32_1 = arith.constant 0 : i32
    return %c0_i32, %c0_i32_0 : i32, i32
  }
  func.func @transform_3(%arg0: i32) -> (i32, i32, i32) {
    %c0_i32 = arith.constant 0 : i32
    %c0_i32_0 = arith.constant 0 : i32
    %c0_i32_1 = arith.constant 0 : i32
    return %arg0, %c0_i32, %c0_i32_0 : i32, i32, i32
  }
}

</mosaic_0001>

<llo_original>
// kernel: tpu_custom_call.1
$region0: #{tpu_custom_call.1}
  #allocation0 [shape = 'u32[]', space=smem, size = 0x4, offset = 0x4, fixed_abs, tag = 'smem constant byte address 0x4 - core index']
  #allocation1 [shape = 'u32[144,128]{1,0:T(1,128)}', space=vmem, size = 0x12000, scoped, tag = 'internal scratch']
  %s0 = inlined_call_operand.hbm [shape: f32[2,32,256], index: 0, kind: input, shape index: {}]
  %s1 = inlined_call_operand.vmem [shape: f32[2,32], index: 1, kind: input, shape index: {}]
  %s2 = inlined_call_operand.vmem [shape: f32[32,2], index: 2, kind: input, shape index: {}]
  %s3 = inlined_call_operand.hbm [shape: f32[2,32,256], index: 3, kind: output, shape index: {}]
  %s4 = sld [smem:[#allocation0]]
  $region49: #{tpu_custom_call.1} parent=0
    _
  %s6 = ssub.s32 1, %s4
  %s7 = scalar_select 0, %s6, %s4
  $region1: #{tpu_custom_call.1} parent=0
    #allocation2 [shape = 'u8[65536]{0}', space=vmem, size = 0x10000, scoped, tag = 'input window, operand 0']
    #allocation3 [shape = 's32[2]{0}', space=sflag, size = 0x8, scoped, tag = 'scoped memory for tpu_custom_call.1']
    #allocation4 [shape = 's32[2]{0}', space=sflag, size = 0x8, scoped, tag = 'scoped memory for tpu_custom_call.1']
    #allocation5 [shape = 'u8[65536]{0}', space=vmem, size = 0x10000, scoped, tag = 'output window, operand 0']
    %8 = vsyncpa [#allocation3], 0
    %s9 = scalar_lea.sflag [#allocation3], 1
    %10 = vsyncpa %s9, 0
    %11 = vsyncpa [#allocation4], 0
    %s12 = scalar_lea.sflag [#allocation4], 1
    %13 = vsyncpa %s12, 0
    loop: start=0, step=1, limit=4
    $region2: #{tpu_custom_call.1} parent=1 // loop_pre_header
      _
    $region3: #{tpu_custom_call.1} parent=1 // loop_header
      %s15 = sphi 0, %s19
      %p16 = scmp.ge.s32.totalorder %s15, 4
      %s25 = sphi 0, %s27
      %s28 = sphi 0, %s25
      %s29 = sphi 0, %s28
      %s45 = sphi 0, %s29
      %s49 = sphi 0, %s49
      %s51 = sphi 0, %s49
      %s52 = sphi 0, %s51
      %s66 = sphi 0, %s52
      %s70 = sphi 0, %s70
      %s72 = sphi 0, %s70
      %s73 = sphi 0, %s72
      %s87 = sphi 0, %s73
      %s93 = sphi 0, %s95
      %s96 = sphi 0, %s93
      %s97 = sphi 0, %s96
      %s113 = sphi 0, %s97
    $region4: #{tpu_custom_call.1} parent=1 // loop_header_branch
      %18 = sbr.rel (%p16) target = $region8
    $region5: #{tpu_custom_call.1} parent=1 // loop_body
      %s20 = ssub.s32 %s15, 1
      %s21 = ssub.s32 %s15, 2
      %s22 = sadd.s32 %s15, 1
      %s23 = ssub.s32 %s15, %s22
      %p24 = scmp.eq.s32.totalorder %s23, 0
      %s26 = sadd.s32 %s25, 1
      %s27 = scalar_select %p24, %s25, %s26
      %p30 = pneg %p24
      %p31 = scmp.eq.s32.totalorder %s15, 1
      %p32 = por %p30, %p31
      %p33 = scmp.ne.s32.totalorder %s25, %s28
      %p34 = scmp.eq.s32.totalorder %s15, 0
      %p35 = por %p33, %p34
      %p36 = scmp.ne.s32.totalorder %s25, %s28
      %p37 = scmp.eq.s32.totalorder %s20, 1
      %p38 = por %p36, %p37
      %p39 = scmp.ne.s32.totalorder %s28, %s29
      %p40 = scmp.eq.s32.totalorder %s20, 0
      %p41 = por %p39, %p40
      %p42 = scmp.ne.s32.totalorder %s28, %s29
      %p43 = scmp.eq.s32.totalorder %s21, 1
      %p44 = por %p42, %p43
      %p46 = scmp.ne.s32.totalorder %s29, %s45
      %p47 = scmp.eq.s32.totalorder %s21, 0
      %p48 = por %p46, %p47
      %s50 = sadd.s32 %s49, 1
      %p53 = scmp.eq.s32.totalorder %s15, 1
      %p54 = scmp.ne.s32.totalorder %s49, %s51
      %p55 = scmp.eq.s32.totalorder %s15, 0
      %p56 = por %p54, %p55
      %p57 = scmp.ne.s32.totalorder %s49, %s51
      %p58 = scmp.eq.s32.totalorder %s20, 1
      %p59 = por %p57, %p58
      %p60 = scmp.ne.s32.totalorder %s51, %s52
      %p61 = scmp.eq.s32.totalorder %s20, 0
      %p62 = por %p60, %p61
      %p63 = scmp.ne.s32.totalorder %s51, %s52
      %p64 = scmp.eq.s32.totalorder %s21, 1
      %p65 = por %p63, %p64
      %p67 = scmp.ne.s32.totalorder %s52, %s66
      %p68 = scmp.eq.s32.totalorder %s21, 0
      %p69 = por %p67, %p68
      %s71 = sadd.s32 %s70, 1
      %p74 = scmp.eq.s32.totalorder %s15, 1
      %p75 = scmp.ne.s32.totalorder %s70, %s72
      %p76 = scmp.eq.s32.totalorder %s15, 0
      %p77 = por %p75, %p76
      %p78 = scmp.ne.s32.totalorder %s70, %s72
      %p79 = scmp.eq.s32.totalorder %s20, 1
      %p80 = por %p78, %p79
      %p81 = scmp.ne.s32.totalorder %s72, %s73
      %p82 = scmp.eq.s32.totalorder %s20, 0
      %p83 = por %p81, %p82
      %p84 = scmp.ne.s32.totalorder %s72, %s73
      %p85 = scmp.eq.s32.totalorder %s21, 1
      %p86 = por %p84, %p85
      %p88 = scmp.ne.s32.totalorder %s73, %s87
      %p89 = scmp.eq.s32.totalorder %s21, 0
      %p90 = por %p88, %p89
      %s91 = ssub.s32 %s15, %s22
      %p92 = scmp.eq.s32.totalorder %s91, 0
      %s94 = sadd.s32 %s93, 1
      %s95 = scalar_select %p92, %s93, %s94
      %p98 = pneg %p92
      %p99 = scmp.eq.s32.totalorder %s15, 1
      %p100 = por %p98, %p99
      %p101 = scmp.ne.s32.totalorder %s93, %s96
      %p102 = scmp.eq.s32.totalorder %s15, 0
      %p103 = por %p101, %p102
      %p104 = scmp.ne.s32.totalorder %s93, %s96
      %p105 = scmp.eq.s32.totalorder %s20, 1
      %p106 = por %p104, %p105
      %p107 = scmp.ne.s32.totalorder %s96, %s97
      %p108 = scmp.eq.s32.totalorder %s20, 0
      %p109 = por %p107, %p108
      %p110 = scmp.ne.s32.totalorder %s96, %s97
      %p111 = scmp.eq.s32.totalorder %s21, 1
      %p112 = por %p110, %p111
      %p114 = scmp.ne.s32.totalorder %s97, %s113
      %p115 = scmp.eq.s32.totalorder %s21, 0
      %p116 = por %p114, %p115
      %p117 = scmp.le.s32.totalorder 1, %s15
      %p118 = scmp.lt.s32.totalorder %s15, 3
      %p119 = pnand %p117, %p118
      %p120 = pneg %p119
      // Predicated region
      $region9: #{tpu_custom_call.1} parent=5 // pred_check
        _
      $region10: #{tpu_custom_call.1} parent=5 // pred_check_branch
        %122 = sbr.rel (%p119) target = $region12
      $region11: #{tpu_custom_call.1} parent=5 // pred_region
        %s123 = ssub.s32 %s15, 1
        // Predicated region
        $region13: #{tpu_custom_call.1} parent=11 // pred_check
          %p124 = pneg %p62
        $region14: #{tpu_custom_call.1} parent=11 // pred_check_branch
          %126 = sbr.rel (%p124) target = $region16
        $region15: #{tpu_custom_call.1} parent=11 // pred_region
          _
        $region16: #{tpu_custom_call.1} parent=11 // pred_fallthru
          _
        // Predicated region
        $region17: #{tpu_custom_call.1} parent=11 // pred_check
          %p127 = pneg %p83
        $region18: #{tpu_custom_call.1} parent=11 // pred_check_branch
          %129 = sbr.rel (%p127) target = $region20
        $region19: #{tpu_custom_call.1} parent=11 // pred_region
          _
        $region20: #{tpu_custom_call.1} parent=11 // pred_fallthru
          _
      $region12: #{tpu_custom_call.1} parent=5 // pred_fallthru
        _
      %p130 = scmp.lt.s32.totalorder %s15, 2
      // Predicated region
      $region21: #{tpu_custom_call.1} parent=5 // pred_check
        %p131 = pneg %p130
      $region22: #{tpu_custom_call.1} parent=5 // pred_check_branch
        %133 = sbr.rel (%p131) target = $region24
      $region23: #{tpu_custom_call.1} parent=5 // pred_region
        // Predicated region
        $region25: #{tpu_custom_call.1} parent=23 // pred_check
          %p134 = pneg %p35
        $region26: #{tpu_custom_call.1} parent=23 // pred_check_branch
          %136 = sbr.rel (%p134) target = $region28
        $region27: #{tpu_custom_call.1} parent=23 // pred_region
          %s137 = sand.u32 %s25, 1
          %s138 = scalar_lea.sflag [#allocation3], %s137
          %s139 = sand.u32 %s25, 1
          %s140 = smul.addr %s139, 64
          %s141 = scalar_lea.vmem [#allocation2], %s140
          %s143 = ssub.s32 1024, 1024
          %144 = vsyncadd %s138, %s143
          %s145 = smul.addr %s15, 8
          %s146 = smul.addr %s145, 128
          %s147 = scalar_lea.hbm %s0, %s146
          %s148 = sshll.u32 %s141, 4
          %s149 = int_to_ptr.vmem [resolvable:$true] %s148
          %154 = dma.hbm_to_vmem [thread:$0]  %s147, 1024, %s149, %s138, 256, 256, 16
        $region28: #{tpu_custom_call.1} parent=23 // pred_fallthru
          _
      $region24: #{tpu_custom_call.1} parent=5 // pred_fallthru
        _
      %p155 = scmp.le.s32.totalorder 1, %s15
      %p156 = scmp.lt.s32.totalorder %s15, 3
      %p157 = pnand %p155, %p156
      %p158 = pneg %p157
      // Predicated region
      $region29: #{tpu_custom_call.1} parent=5 // pred_check
        _
      $region30: #{tpu_custom_call.1} parent=5 // pred_check_branch
        %160 = sbr.rel (%p157) target = $region32
      $region31: #{tpu_custom_call.1} parent=5 // pred_region
        %s161 = ssub.s32 %s15, 1
        %s162 = sand.u32 %s28, 1
        %s163 = scalar_lea.sflag [#allocation3], %s162
        %s164 = sand.u32 %s28, 1
        %s165 = smul.addr %s164, 64
        %s166 = scalar_lea.vmem [#allocation2], %s165
        // Predicated region
        $region33: #{tpu_custom_call.1} parent=31 // pred_check
          %p167 = pneg %p41
        $region34: #{tpu_custom_call.1} parent=31 // pred_check_branch
          %169 = sbr.rel (%p167) target = $region36
        $region35: #{tpu_custom_call.1} parent=31 // pred_region
          %170 = dma.done %s163, 1024
        $region36: #{tpu_custom_call.1} parent=31 // pred_fallthru
          _
        %s171 = sand.u32 %s28, 1
        %s172 = scalar_lea.sflag [#allocation3], %s171
        %s173 = sand.u32 %s28, 1
        %s174 = smul.addr %s173, 64
        %s175 = scalar_lea.vmem [#allocation2], %s174
        %p176 = pneg %p41
        %p177 = pneg %p38
        %p178 = pneg %p62
        %p179 = pneg %p59
        %p180 = pneg %p83
        %p181 = pneg %p80
        %p182 = pneg %p109
        %p183 = pneg %p106
        %s184 = sand.u32 %s96, 1
        %s185 = scalar_lea.sflag [#allocation4], %s184
        %s186 = sand.u32 %s96, 1
        %s187 = smul.addr %s186, 64
        %s188 = scalar_lea.vmem [#allocation5], %s187
        %v189 = vld [vmem:[%s166] sm:$0xff]
        %v190 = vld [vmem:[%s166 + $0x8] sm:$0xff]
        %v191 = vld [vmem:[%s166 + $0x10] sm:$0xff]
        %v192 = vld [vmem:[%s166 + $0x18] sm:$0xff]
        %v193 = vld [vmem:[%s166 + $0x20] sm:$0xff]
        %v194 = vld [vmem:[%s166 + $0x28] sm:$0xff]
        %v195 = vld [vmem:[%s166 + $0x30] sm:$0xff]
        %v196 = vld [vmem:[%s166 + $0x38] sm:$0xff]
        %v197 = vmax.f32 %v189, %v190
        %198 = vmax.xlane.f32.xlu0 %v197
        %v199 = vpop.xlane.xlu0 %198
        %v200 = vmax.f32 %v191, %v192
        %201 = vmax.xlane.f32.xlu0 %v200
        %v202 = vpop.xlane.xlu0 %201
        %v203 = vmax.f32 %v193, %v194
        %204 = vmax.xlane.f32.xlu0 %v203
        %v205 = vpop.xlane.xlu0 %204
        %v206 = vmax.f32 %v195, %v196
        %207 = vmax.xlane.f32.xlu0 %v206
        %v208 = vpop.xlane.xlu0 %207
        %v209 = vld [vmem:[%s1] sm:$0x3]
        %v214 = vlaneseq
        %v215 = vand.u32 %v214, 127
        %v216 = vlaneseq
        %v217 = vshrl.u32 %v216, 7
        %v218 = vsub.s32 %v215, %v217
        %v219 = vrot.slane %v199, %v218
        %v220 = vadd.s32 %v215, 4294967288
        %v221 = vlaneseq
        %v222 = vshrl.u32 %v221, 7
        %v223 = vsub.s32 %v220, %v222
        %v224 = vrot.slane %v202, %v223
        %vm225 = vcmask 130112
        %v226 = vsel %vm225, %v224, %v219
        %v227 = vadd.s32 %v215, 4294967280
        %v228 = vlaneseq
        %v229 = vshrl.u32 %v228, 7
        %v230 = vsub.s32 %v227, %v229
        %v231 = vrot.slane %v205, %v230
        %vm232 = vcmask 195712
        %v233 = vsel %vm232, %v231, %v226
        %v234 = vadd.s32 %v215, 4294967272
        %v235 = vlaneseq
        %v236 = vshrl.u32 %v235, 7
        %v237 = vsub.s32 %v234, %v236
        %v238 = vrot.slane %v208, %v237
        %vm239 = vcmask 261312
        %v240 = vsel %vm239, %v238, %v233
        %v242 = vmul.f32 %v209, %v240
        %vm243 = vcmask 254976
        %v244 = vsel %vm243, %v242, 0.0
        %245 = vadd.xlane.f32.xlu0 %v244
        %v246 = vpop.xlane.xlu0 %245
        %v247 = vmax.f32 %v246, 0.0
        %v248 = vld [vmem:[%s2] sm:$0xff]
        %v249 = vld [vmem:[%s2 + $0x8] sm:$0xff]
        %v250 = vld [vmem:[%s2 + $0x10] sm:$0xff]
        %v251 = vld [vmem:[%s2 + $0x18] sm:$0xff]
        %v253 = vlaneseq
        %v254 = vshrl.u32 %v253, 7
        %v255 = vsub.s32 %v215, %v254
        %v256 = vrot.slane %v247, %v255
        %vm257 = vcmask 1042434
        %v258 = vsel %vm257, %v256, %v256
        %vm259 = vcmask 1043459
        %v260 = vsel %vm259, %v256, %v258
        %vm261 = vcmask 1044484
        %v262 = vsel %vm261, %v256, %v260
        %vm263 = vcmask 1045509
        %v264 = vsel %vm263, %v256, %v262
        %vm265 = vcmask 1046534
        %v266 = vsel %vm265, %v256, %v264
        %vm267 = vcmask 1047559
        %v268 = vsel %vm267, %v256, %v266
        %v270 = vmul.f32 %v248, %v268
        %v271 = vmul.f32 %v249, %v268
        %v272 = vmul.f32 %v250, %v268
        %v273 = vmul.f32 %v251, %v268
        %vm274 = vcmask 15360
        %v275 = vsel %vm274, %v270, 0.0
        %276 = vadd.xlane.f32.xlu0 %v275
        %v277 = vpop.xlane.xlu0 %276
        %v278 = vsel %vm274, %v271, 0.0
        %279 = vadd.xlane.f32.xlu0 %v278
        %v280 = vpop.xlane.xlu0 %279
        %v281 = vsel %vm274, %v272, 0.0
        %282 = vadd.xlane.f32.xlu0 %v281
        %v283 = vpop.xlane.xlu0 %282
        %v284 = vsel %vm274, %v273, 0.0
        %285 = vadd.xlane.f32.xlu0 %v284
        %v286 = vpop.xlane.xlu0 %285
        %v287 = vxor.u32 %v277, 2147483648
        %v288 = vxor.u32 %v280, 2147483648
        %v289 = vxor.u32 %v283, 2147483648
        %v290 = vxor.u32 %v286, 2147483648
        %v291 = vmul.f32 %v287, 1.442695
        %v292 = vpow.pop %v291
        %v293 = vmul.f32 %v288, 1.442695
        %v294 = vpow.pop %v293
        %v295 = vmul.f32 %v289, 1.442695
        %v296 = vpow.pop %v295
        %v297 = vmul.f32 %v290, 1.442695
        %v298 = vpow.pop %v297
        %v299 = vadd.f32 %v292, 1.0
        %v300 = vadd.f32 %v294, 1.0
        %v301 = vadd.f32 %v296, 1.0
        %v302 = vadd.f32 %v298, 1.0
        %v303 = vrcp.pop %v299
        %v304 = vmul.f32 1.0, %v303
        %v305 = vrcp.pop %v300
        %v306 = vmul.f32 1.0, %v305
        %v307 = vrcp.pop %v301
        %v308 = vmul.f32 1.0, %v307
        %v309 = vrcp.pop %v302
        %v310 = vmul.f32 1.0, %v309
        %v311 = vmul.f32 %v189, %v304
        %v312 = vmul.f32 %v190, %v304
        %v313 = vmul.f32 %v191, %v306
        %v314 = vmul.f32 %v192, %v306
        %v315 = vmul.f32 %v193, %v308
        %v316 = vmul.f32 %v194, %v308
        %v317 = vmul.f32 %v195, %v310
        %v318 = vmul.f32 %v196, %v310
        %319 = vst [vmem:[%s188] sm:$0xff] %v311
        %320 = vst [vmem:[%s188 + $0x8] sm:$0xff] %v312
        %321 = vst [vmem:[%s188 + $0x10] sm:$0xff] %v313
        %322 = vst [vmem:[%s188 + $0x18] sm:$0xff] %v314
        %323 = vst [vmem:[%s188 + $0x20] sm:$0xff] %v315
        %324 = vst [vmem:[%s188 + $0x28] sm:$0xff] %v316
        %325 = vst [vmem:[%s188 + $0x30] sm:$0xff] %v317
        %326 = vst [vmem:[%s188 + $0x38] sm:$0xff] %v318
        %s327 = sand.u32 %s96, 1
        %s328 = scalar_lea.sflag [#allocation4], %s327
        %s329 = sand.u32 %s96, 1
        %s330 = smul.addr %s329, 64
        %s331 = scalar_lea.vmem [#allocation5], %s330
        // Predicated region
        $region37: #{tpu_custom_call.1} parent=31 // pred_check
          %p332 = pneg %p106
        $region38: #{tpu_custom_call.1} parent=31 // pred_check_branch
          %334 = sbr.rel (%p332) target = $region40
        $region39: #{tpu_custom_call.1} parent=31 // pred_region
          %s336 = ssub.s32 1024, 1024
          %337 = vsyncadd %s328, %s336
          %s338 = smul.addr %s20, 8
          %s339 = smul.addr %s338, 128
          %s340 = scalar_lea.hbm %s3, %s339
          %s341 = sshll.u32 %s331, 4
          %s342 = int_to_ptr.vmem [resolvable:$true] %s341
          %347 = dma.vmem_to_hbm [thread:$0]  %s342, 1024, %s340, %s328, 256, 256, 16
        $region40: #{tpu_custom_call.1} parent=31 // pred_fallthru
          _
      $region32: #{tpu_custom_call.1} parent=5 // pred_fallthru
        _
      %p348 = scmp.le.s32.totalorder 2, %s15
      // Predicated region
      $region41: #{tpu_custom_call.1} parent=5 // pred_check
        %p349 = pneg %p348
      $region42: #{tpu_custom_call.1} parent=5 // pred_check_branch
        %351 = sbr.rel (%p349) target = $region44
      $region43: #{tpu_custom_call.1} parent=5 // pred_region
        %s352 = ssub.s32 %s15, 2
        // Predicated region
        $region45: #{tpu_custom_call.1} parent=43 // pred_check
          %p353 = pneg %p112
        $region46: #{tpu_custom_call.1} parent=43 // pred_check_branch
          %355 = sbr.rel (%p353) target = $region48
        $region47: #{tpu_custom_call.1} parent=43 // pred_region
          %s356 = sand.u32 %s97, 1
          %s357 = scalar_lea.sflag [#allocation4], %s356
          %s358 = sand.u32 %s97, 1
          %s359 = smul.addr %s358, 64
          %s360 = scalar_lea.vmem [#allocation5], %s359
          %361 = dma.done %s357, 1024
        $region48: #{tpu_custom_call.1} parent=43 // pred_fallthru
          _
      $region44: #{tpu_custom_call.1} parent=5 // pred_fallthru
        _
    $region6: #{tpu_custom_call.1} parent=1 // loop_footer
      %s19 = sadd.s32 1, %s15
    $region7: #{tpu_custom_call.1} parent=1 // loop_footer_branch
      %14 = sbr.rel target = $region3
    $region8: #{tpu_custom_call.1} parent=1 // loop_exit
      _
    %362 = vsyncpa [#allocation3], 1
    %s363 = scalar_lea.sflag [#allocation3], 1
    %364 = vsyncpa %s363, 1
    %365 = vsyncpa [#allocation4], 1
    %s366 = scalar_lea.sflag [#allocation4], 1
    %367 = vsyncpa %s366, 1

</llo_original>
